<compile_context>
chip_gen: v7x
topology: tpu7x:2x2x1
jax: 0.10.0
libtpu: 0.0.40
codegen_flags: <defaults>
</compile_context>

<pallas_src>
import functools

import jax
import jax.numpy as jnp
from jax import lax
from jax.experimental import pallas as pl
from jax.experimental.pallas import tpu as pltpu

LANES = 128
SUBLANES = 8


def _round_up(x, m):
    return (x + m - 1) // m * m


def _rnn_seq_kernel(xproj_ref, h0_ref, w_hid_ref, out_ref, hid_ref, *,
                    hidden_size, output_size, block_t):
    """One grid step = `block_t` RNN timesteps for one batch chunk.

    xproj_ref: (block_t, Bc, N_pad)  precomputed x_t @ W_in + bias (off the serial path)
    h0_ref   : (Bc, N_pad)           initial-hidden slab (used at time-block 0)
    w_hid_ref: (N_pad, N_pad)        hidden-part fused [i2h | i2o] weight (VMEM-resident)
    out_ref  : (block_t, Bc, N_pad)  [new_hidden | log_softmax(logits) | pad] per step
    hid_ref  : VMEM scratch (Bc, N_pad) recurrent state, persists across time blocks
    """
    H, O = hidden_size, output_size
    Bc, N_pad = h0_ref.shape

    @pl.when(pl.program_id(1) == 0)          # first time-block of this batch chunk
    def _():
        hid_ref[...] = h0_ref[...]

    # Hoisted lane masks: built once per grid block, reused by every timestep.
    col = lax.broadcasted_iota(jnp.int32, (Bc, N_pad), 1)
    is_hidden = col < H
    is_logit = (col >= H) & (col < H + O)
    neg_mask = jnp.where(is_logit, 0.0, -1e30).astype(jnp.float32)

    def step(t, carry):
        # Only the small h @ W_hid dot remains on the serial critical path.
        z = jnp.dot(hid_ref[...], w_hid_ref[...],
                    preferred_element_type=jnp.float32) + xproj_ref[t]

        # Carry only the true hidden lanes (robust to any non-zero padded weight rows).
        hid_ref[...] = jnp.where(is_hidden, z, 0.0)

        # Numerically-stable log-softmax over the O logit lanes ([H, H+O)).
        masked = z + neg_mask
        m = jnp.max(masked, axis=1, keepdims=True)
        shifted = masked - m
        lse = jnp.log(jnp.sum(jnp.exp(shifted), axis=1, keepdims=True))
        log_sm = shifted - lse

        # Lane-dense slab: hidden in lanes [0, H), log-softmax in [H, H+O).
        out_ref[t] = jnp.where(is_logit, log_sm, z).astype(out_ref.dtype)
        return carry

    lax.fori_loop(0, block_t, step, 0, unroll=True)


def netz_forward_sequence(xs, hidden0, w_in, w_hid, bias, *,
                          hidden_size, output_size, block_t=8, block_b=None):
    """Run T RNN-cell steps with a single pallas_call.

    xs:      (T, B, input_size)
    hidden0: (B, hidden_size)
    w_in:    (I_pad, N_pad)  packed input-part weight   (see prepare_params)
    w_hid:   (N_pad, N_pad)  packed hidden-part weight
    bias:    (1, N_pad)      packed [bh | bo | 0]
    returns: (outputs (T, B, O) log-probs, hiddens (T, B, H))
    """
    T, B, I = xs.shape
    H, O = hidden_size, output_size
    I_pad, N_pad = w_in.shape

    block_t = max(1, min(block_t, T))
    B_pad_base = _round_up(B, SUBLANES)
    if block_b is None:
        block_b = B_pad_base
    block_b = _round_up(block_b, SUBLANES)
    B_pad = _round_up(B_pad_base, block_b)
    T_pad = _round_up(T, block_t)

    # Pad to lane/sublane-dense shapes (zeros contribute nothing to the matmuls).
    xs_p = jnp.zeros((T, B_pad, I_pad), jnp.float32).at[:, :B, :I].set(xs)

    # Hoisted input projection: ONE (T*B_pad, I_pad) @ (I_pad, N_pad) matmul with the
    # bias folded in -- T x better MXU row utilization, off the serial recurrence.
    xproj = (xs_p.reshape(T * B_pad, I_pad) @ w_in + bias).reshape(T, B_pad, N_pad)
    xproj_p = jnp.zeros((T_pad, B_pad, N_pad), jnp.float32).at[:T].set(xproj)

    h0_p = jnp.zeros((B_pad, N_pad), jnp.float32).at[:B, :H].set(hidden0)

    kernel = functools.partial(_rnn_seq_kernel, hidden_size=H, output_size=O,
                               block_t=block_t)

    slab = pl.pallas_call(
        kernel,
        out_shape=jax.ShapeDtypeStruct((T_pad, B_pad, N_pad), jnp.float32),
        grid=(B_pad // block_b, T_pad // block_t),
        in_specs=[
            pl.BlockSpec((block_t, block_b, N_pad), lambda b, t: (t, b, 0)),  # xproj
            pl.BlockSpec((block_b, N_pad), lambda b, t: (b, 0)),              # h0
            pl.BlockSpec((N_pad, N_pad), lambda b, t: (0, 0)),                # W_hid (resident)
        ],
        out_specs=pl.BlockSpec((block_t, block_b, N_pad), lambda b, t: (t, b, 0)),
        scratch_shapes=[pltpu.VMEM((block_b, N_pad), jnp.float32)],           # recurrent state
        compiler_params=pltpu.CompilerParams(
            dimension_semantics=("parallel", "arbitrary")),  # batch chunks ||, time serial
    )(xproj_p, h0_p, w_hid)

    outputs = slab[:T, :B, H:H + O]   # per-step log-softmax
    hiddens = slab[:T, :B, :H]        # per-step hidden state
    return outputs, hiddens


def netz_forward(x, hidden, w_in, w_hid, bias, *, hidden_size, output_size):
    """Exact equivalent of Netz.forward(input, hidden) -> (output, hidden)."""
    outs, hids = netz_forward_sequence(x[None], hidden, w_in, w_hid, bias,
                                       hidden_size=hidden_size,
                                       output_size=output_size, block_t=1)
    return outs[0], hids[0]


def prepare_params(wh, bh, wo, bo, input_size):
    """Pack PyTorch-layout params into the fused, padded kernel layout (run once).

    wh: (H, I+H)  bh: (H,)  wo: (O, I+H)  bo: (O,)   [nn.Linear layout]
    """
    H = wh.shape[0]
    O = wo.shape[0]
    I = input_size
    N = H + O
    I_pad = _round_up(I, LANES)
    N_pad = _round_up(N, LANES)

    w_in = jnp.zeros((I_pad, N_pad), jnp.float32)
    w_in = w_in.at[:I, :H].set(wh[:, :I].T)      # i2h, input part
    w_in = w_in.at[:I, H:N].set(wo[:, :I].T)     # i2o, input part

    w_hid = jnp.zeros((N_pad, N_pad), jnp.float32)
    w_hid = w_hid.at[:H, :H].set(wh[:, I:].T)    # i2h, hidden part
    w_hid = w_hid.at[:H, H:N].set(wo[:, I:].T)   # i2o, hidden part

    bias = jnp.zeros((1, N_pad), jnp.float32)
    bias = bias.at[0, :H].set(bh)
    bias = bias.at[0, H:N].set(bo)
    return w_in, w_hid, bias


def init_params(key, input_size, hidden_size, output_size):
    """Deterministic init mimicking nn.Linear's U(-1/sqrt(fan_in), 1/sqrt(fan_in))."""
    k1, k2, k3, k4 = jax.random.split(key, 4)
    fan_in = input_size + hidden_size
    bound = 1.0 / (fan_in ** 0.5)
    wh = jax.random.uniform(k1, (hidden_size, fan_in), jnp.float32, -bound, bound)
    bh = jax.random.uniform(k2, (hidden_size,), jnp.float32, -bound, bound)
    wo = jax.random.uniform(k3, (output_size, fan_in), jnp.float32, -bound, bound)
    bo = jax.random.uniform(k4, (output_size,), jnp.float32, -bound, bound)
    return wh, bh, wo, bo


if __name__ == "__main__":
    input_size, hidden_size, output_size = 16, 32, 8
    batch, seq_len = 2, 8

    key = jax.random.PRNGKey(0)
    kx, kp = jax.random.split(key, 2)

    xs = jax.random.normal(kx, (seq_len, batch, input_size), jnp.float32)
    hidden0 = jnp.zeros((batch, hidden_size), jnp.float32)   # Netz.initHidden()
    wh, bh, wo, bo = init_params(kp, input_size, hidden_size, output_size)

    # One-time parameter packing (outside the hot path).
    w_in, w_hid, bias = prepare_params(wh, bh, wo, bo, input_size)

    seq_fn = jax.jit(functools.partial(netz_forward_sequence,
                                       hidden_size=hidden_size,
                                       output_size=output_size,
                                       block_t=8))
    outputs, hiddens = seq_fn(xs, hidden0, w_in, w_hid, bias)
    jax.block_until_ready((outputs, hiddens))

    # Pure-JAX reference: apply Netz.forward step by step.
    def ref_step(h, x):
        comb = jnp.concatenate([x, h], axis=1)
        h_new = comb @ wh.T + bh
        out = jax.nn.log_softmax(comb @ wo.T + bo, axis=1)
        return h_new, (out, h_new)

    _, (ref_outs, ref_hids) = jax.lax.scan(ref_step, hidden0, xs)

    assert outputs.shape == (seq_len, batch, output_size)
    assert hiddens.shape == (seq_len, batch, hidden_size)
    assert bool(jnp.allclose(outputs, ref_outs, atol=1e-4, rtol=1e-4))
    assert bool(jnp.allclose(hiddens, ref_hids, atol=1e-4, rtol=1e-4))
    probs_sum = jnp.sum(jnp.exp(outputs), axis=-1)
    assert bool(jnp.all(jnp.abs(probs_sum - 1.0) < 1e-4))

    # Single-step path matching Netz.forward(input, hidden) exactly.
    step_fn = jax.jit(functools.partial(netz_forward,
                                        hidden_size=hidden_size,
                                        output_size=output_size))
    out1, h1 = step_fn(xs[0], hidden0, w_in, w_hid, bias)
    jax.block_until_ready((out1, h1))
    assert bool(jnp.allclose(out1, ref_outs[0], atol=1e-4, rtol=1e-4))
    assert bool(jnp.allclose(h1, ref_hids[0], atol=1e-4, rtol=1e-4))

    print("KERNEL_OK")
</pallas_src>

<mosaic_0001>
module attributes {stable_mosaic.version = 11 : i64} {
  func.func @_rnn_seq_kernel(%arg0: i32, %arg1: i32, %arg2: memref<8x8x128xf32, #tpu.memory_space<vmem>>, %arg3: memref<8x128xf32, #tpu.memory_space<vmem>>, %arg4: memref<128x128xf32, #tpu.memory_space<vmem>>, %arg5: memref<8x8x128xf32, #tpu.memory_space<vmem>>, %arg6: memref<8x128xf32, #tpu.memory_space<vmem>>) attributes {dimension_semantics = [#tpu.dimension_semantics<parallel>, #tpu.dimension_semantics<arbitrary>], iteration_bounds = array<i64: 1, 1>, scalar_prefetch = 0 : i64, scratch_operands = 1 : i64, tpu.core_type = #tpu.core_type<tc>, window_params = [{transform_indices = @transform_0, window_bounds = array<i64: 8, 8, 128>}, {transform_indices = @transform_1, window_bounds = array<i64: 8, 128>}, {pipeline_mode = #tpu.pipeline_mode<synchronous>, transform_indices = @transform_2, window_bounds = array<i64: 128, 128>}, {transform_indices = @transform_3, window_bounds = array<i64: 8, 8, 128>}]} {
    %c0_i32 = arith.constant 0 : i32
    %0 = arith.cmpi eq, %arg1, %c0_i32 : i32
    %1 = arith.extui %0 : i1 to i32
    %c0_i32_0 = arith.constant 0 : i32
    %2 = arith.cmpi ne, %1, %c0_i32_0 : i32
    scf.if %2 {
      %c0_115 = arith.constant 0 : index
      %c0_116 = arith.constant 0 : index
      %222 = vector.load %arg3[%c0_115, %c0_116] : memref<8x128xf32, #tpu.memory_space<vmem>>, vector<8x128xf32>
      %c0_117 = arith.constant 0 : index
      %c0_118 = arith.constant 0 : index
      %223 = vector.load %arg6[%c0_117, %c0_118] : memref<8x128xf32, #tpu.memory_space<vmem>>, vector<8x128xf32>
      tpu.vector_store %arg6[%c0_117, %c0_118], %222 {strides = array<i32>} : memref<8x128xf32, #tpu.memory_space<vmem>>, vector<8x128xf32>,
    } else {
    }
    %3 = tpu.iota {dimensions = array<i32: 1>} : vector<8x128xi32>
    %c32_i32 = arith.constant 32 : i32
    %4 = vector.broadcast %c32_i32 : i32 to vector<8x128xi32>
    %5 = arith.cmpi slt, %3, %4 : vector<8x128xi32>
    %c32_i32_1 = arith.constant 32 : i32
    %6 = vector.broadcast %c32_i32_1 : i32 to vector<8x128xi32>
    %7 = arith.cmpi sge, %3, %6 : vector<8x128xi32>
    %c40_i32 = arith.constant 40 : i32
    %8 = vector.broadcast %c40_i32 : i32 to vector<8x128xi32>
    %9 = arith.cmpi slt, %3, %8 : vector<8x128xi32>
    %10 = arith.andi %7, %9 : vector<8x128xi1>
    %cst = arith.constant 0.000000e+00 : f32
    %cst_2 = arith.constant -1.000000e+30 : f32
    %11 = vector.broadcast %cst : f32 to vector<8x128xf32>
    %12 = vector.broadcast %cst_2 : f32 to vector<8x128xf32>
    %13 = arith.select %10, %11, %12 : vector<8x128xi1>, vector<8x128xf32>
    %c0_i32_3 = arith.constant 0 : i32
    %c0 = arith.constant 0 : index
    %c0_4 = arith.constant 0 : index
    %14 = vector.load %arg6[%c0, %c0_4] : memref<8x128xf32, #tpu.memory_space<vmem>>, vector<8x128xf32>
    %c0_5 = arith.constant 0 : index
    %c0_6 = arith.constant 0 : index
    %15 = vector.load %arg4[%c0_5, %c0_6] : memref<128x128xf32, #tpu.memory_space<vmem>>, vector<128x128xf32>
    %cst_7 = arith.constant dense<0.000000e+00> : vector<8x128xf32>
    %16 = tpu.matmul %14, %15, %cst_7 {dimension_numbers = #tpu.dot_dimension_numbers<[1], [0], [0], [1], [0, 0, 1, 1], [], []>} : vector<8x128xf32>, vector<128x128xf32>, vector<8x128xf32> -> vector<8x128xf32>
    %17 = arith.index_cast %c0_i32_3 : i32 to index
    %c0_8 = arith.constant 0 : index
    %c0_9 = arith.constant 0 : index
    %18 = vector.load %arg2[%17, %c0_8, %c0_9] : memref<8x8x128xf32, #tpu.memory_space<vmem>>, vector<1x8x128xf32>
    %19 = vector.shape_cast %18 : vector<1x8x128xf32> to vector<8x128xf32>
    %20 = arith.addf %16, %19 : vector<8x128xf32>
    %cst_10 = arith.constant 0.000000e+00 : f32
    %21 = vector.broadcast %cst_10 : f32 to vector<8x128xf32>
    %22 = arith.select %5, %20, %21 : vector<8x128xi1>, vector<8x128xf32>
    %c0_11 = arith.constant 0 : index
    %c0_12 = arith.constant 0 : index
    %23 = vector.load %arg6[%c0_11, %c0_12] : memref<8x128xf32, #tpu.memory_space<vmem>>, vector<8x128xf32>
    tpu.vector_store %arg6[%c0_11, %c0_12], %22 {strides = array<i32>} : memref<8x128xf32, #tpu.memory_space<vmem>>, vector<8x128xf32>,
    %24 = arith.addf %20, %13 : vector<8x128xf32>
    %cst_13 = arith.constant dense<0xFF800000> : vector<8xf32>
    %25 = vector.multi_reduction <maximumf>, %24, %cst_13 [1] : vector<8x128xf32> to vector<8xf32>
    %26 = vector.shape_cast %25 : vector<8xf32> to vector<8x1xf32>
    %27 = vector.broadcast %26 : vector<8x1xf32> to vector<8x128xf32>
    %28 = arith.subf %24, %27 : vector<8x128xf32>
    %29 = math.exp %28 : vector<8x128xf32>
    %cst_14 = arith.constant dense<0.000000e+00> : vector<8xf32>
    %30 = vector.multi_reduction <add>, %29, %cst_14 [1] : vector<8x128xf32> to vector<8xf32>
    %31 = vector.shape_cast %30 : vector<8xf32> to vector<8x1xf32>
    %32 = math.log %31 : vector<8x1xf32>
    %33 = vector.broadcast %32 : vector<8x1xf32> to vector<8x128xf32>
    %34 = arith.subf %28, %33 : vector<8x128xf32>
    %35 = arith.select %10, %34, %20 : vector<8x128xi1>, vector<8x128xf32>
    %36 = arith.index_cast %c0_i32_3 : i32 to index
    %c0_15 = arith.constant 0 : index
    %c0_16 = arith.constant 0 : index
    %37 = vector.load %arg5[%36, %c0_15, %c0_16] : memref<8x8x128xf32, #tpu.memory_space<vmem>>, vector<1x8x128xf32>
    %38 = vector.shape_cast %37 : vector<1x8x128xf32> to vector<8x128xf32>
    %39 = vector.shape_cast %35 : vector<8x128xf32> to vector<1x8x128xf32>
    tpu.vector_store %arg5[%36, %c0_15, %c0_16], %39 {strides = array<i32>} : memref<8x8x128xf32, #tpu.memory_space<vmem>>, vector<1x8x128xf32>,
    %c1_i32 = arith.constant 1 : i32
    %c0_17 = arith.constant 0 : index
    %c0_18 = arith.constant 0 : index
    %40 = vector.load %arg6[%c0_17, %c0_18] : memref<8x128xf32, #tpu.memory_space<vmem>>, vector<8x128xf32>
    %c0_19 = arith.constant 0 : index
    %c0_20 = arith.constant 0 : index
    %41 = vector.load %arg4[%c0_19, %c0_20] : memref<128x128xf32, #tpu.memory_space<vmem>>, vector<128x128xf32>
    %cst_21 = arith.constant dense<0.000000e+00> : vector<8x128xf32>
    %42 = tpu.matmul %40, %41, %cst_21 {dimension_numbers = #tpu.dot_dimension_numbers<[1], [0], [0], [1], [0, 0, 1, 1], [], []>} : vector<8x128xf32>, vector<128x128xf32>, vector<8x128xf32> -> vector<8x128xf32>
    %43 = arith.index_cast %c1_i32 : i32 to index
    %c0_22 = arith.constant 0 : index
    %c0_23 = arith.constant 0 : index
    %44 = vector.load %arg2[%43, %c0_22, %c0_23] : memref<8x8x128xf32, #tpu.memory_space<vmem>>, vector<1x8x128xf32>
    %45 = vector.shape_cast %44 : vector<1x8x128xf32> to vector<8x128xf32>
    %46 = arith.addf %42, %45 : vector<8x128xf32>
    %cst_24 = arith.constant 0.000000e+00 : f32
    %47 = vector.broadcast %cst_24 : f32 to vector<8x128xf32>
    %48 = arith.select %5, %46, %47 : vector<8x128xi1>, vector<8x128xf32>
    %c0_25 = arith.constant 0 : index
    %c0_26 = arith.constant 0 : index
    %49 = vector.load %arg6[%c0_25, %c0_26] : memref<8x128xf32, #tpu.memory_space<vmem>>, vector<8x128xf32>
    tpu.vector_store %arg6[%c0_25, %c0_26], %48 {strides = array<i32>} : memref<8x128xf32, #tpu.memory_space<vmem>>, vector<8x128xf32>,
    %50 = arith.addf %46, %13 : vector<8x128xf32>
    %cst_27 = arith.constant dense<0xFF800000> : vector<8xf32>
    %51 = vector.multi_reduction <maximumf>, %50, %cst_27 [1] : vector<8x128xf32> to vector<8xf32>
    %52 = vector.shape_cast %51 : vector<8xf32> to vector<8x1xf32>
    %53 = vector.broadcast %52 : vector<8x1xf32> to vector<8x128xf32>
    %54 = arith.subf %50, %53 : vector<8x128xf32>
    %55 = math.exp %54 : vector<8x128xf32>
    %cst_28 = arith.constant dense<0.000000e+00> : vector<8xf32>
    %56 = vector.multi_reduction <add>, %55, %cst_28 [1] : vector<8x128xf32> to vector<8xf32>
    %57 = vector.shape_cast %56 : vector<8xf32> to vector<8x1xf32>
    %58 = math.log %57 : vector<8x1xf32>
    %59 = vector.broadcast %58 : vector<8x1xf32> to vector<8x128xf32>
    %60 = arith.subf %54, %59 : vector<8x128xf32>
    %61 = arith.select %10, %60, %46 : vector<8x128xi1>, vector<8x128xf32>
    %62 = arith.index_cast %c1_i32 : i32 to index
    %c0_29 = arith.constant 0 : index
    %c0_30 = arith.constant 0 : index
    %63 = vector.load %arg5[%62, %c0_29, %c0_30] : memref<8x8x128xf32, #tpu.memory_space<vmem>>, vector<1x8x128xf32>
    %64 = vector.shape_cast %63 : vector<1x8x128xf32> to vector<8x128xf32>
    %65 = vector.shape_cast %61 : vector<8x128xf32> to vector<1x8x128xf32>
    tpu.vector_store %arg5[%62, %c0_29, %c0_30], %65 {strides = array<i32>} : memref<8x8x128xf32, #tpu.memory_space<vmem>>, vector<1x8x128xf32>,
    %c2_i32 = arith.constant 2 : i32
    %c0_31 = arith.constant 0 : index
    %c0_32 = arith.constant 0 : index
    %66 = vector.load %arg6[%c0_31, %c0_32] : memref<8x128xf32, #tpu.memory_space<vmem>>, vector<8x128xf32>
    %c0_33 = arith.constant 0 : index
    %c0_34 = arith.constant 0 : index
    %67 = vector.load %arg4[%c0_33, %c0_34] : memref<128x128xf32, #tpu.memory_space<vmem>>, vector<128x128xf32>
    %cst_35 = arith.constant dense<0.000000e+00> : vector<8x128xf32>
    %68 = tpu.matmul %66, %67, %cst_35 {dimension_numbers = #tpu.dot_dimension_numbers<[1], [0], [0], [1], [0, 0, 1, 1], [], []>} : vector<8x128xf32>, vector<128x128xf32>, vector<8x128xf32> -> vector<8x128xf32>
    %69 = arith.index_cast %c2_i32 : i32 to index
    %c0_36 = arith.constant 0 : index
    %c0_37 = arith.constant 0 : index
    %70 = vector.load %arg2[%69, %c0_36, %c0_37] : memref<8x8x128xf32, #tpu.memory_space<vmem>>, vector<1x8x128xf32>
    %71 = vector.shape_cast %70 : vector<1x8x128xf32> to vector<8x128xf32>
    %72 = arith.addf %68, %71 : vector<8x128xf32>
    %cst_38 = arith.constant 0.000000e+00 : f32
    %73 = vector.broadcast %cst_38 : f32 to vector<8x128xf32>
    %74 = arith.select %5, %72, %73 : vector<8x128xi1>, vector<8x128xf32>
    %c0_39 = arith.constant 0 : index
    %c0_40 = arith.constant 0 : index
    %75 = vector.load %arg6[%c0_39, %c0_40] : memref<8x128xf32, #tpu.memory_space<vmem>>, vector<8x128xf32>
    tpu.vector_store %arg6[%c0_39, %c0_40], %74 {strides = array<i32>} : memref<8x128xf32, #tpu.memory_space<vmem>>, vector<8x128xf32>,
    %76 = arith.addf %72, %13 : vector<8x128xf32>
    %cst_41 = arith.constant dense<0xFF800000> : vector<8xf32>
    %77 = vector.multi_reduction <maximumf>, %76, %cst_41 [1] : vector<8x128xf32> to vector<8xf32>
    %78 = vector.shape_cast %77 : vector<8xf32> to vector<8x1xf32>
    %79 = vector.broadcast %78 : vector<8x1xf32> to vector<8x128xf32>
    %80 = arith.subf %76, %79 : vector<8x128xf32>
    %81 = math.exp %80 : vector<8x128xf32>
    %cst_42 = arith.constant dense<0.000000e+00> : vector<8xf32>
    %82 = vector.multi_reduction <add>, %81, %cst_42 [1] : vector<8x128xf32> to vector<8xf32>
    %83 = vector.shape_cast %82 : vector<8xf32> to vector<8x1xf32>
    %84 = math.log %83 : vector<8x1xf32>
    %85 = vector.broadcast %84 : vector<8x1xf32> to vector<8x128xf32>
    %86 = arith.subf %80, %85 : vector<8x128xf32>
    %87 = arith.select %10, %86, %72 : vector<8x128xi1>, vector<8x128xf32>
    %88 = arith.index_cast %c2_i32 : i32 to index
    %c0_43 = arith.constant 0 : index
    %c0_44 = arith.constant 0 : index
    %89 = vector.load %arg5[%88, %c0_43, %c0_44] : memref<8x8x128xf32, #tpu.memory_space<vmem>>, vector<1x8x128xf32>
    %90 = vector.shape_cast %89 : vector<1x8x128xf32> to vector<8x128xf32>
    %91 = vector.shape_cast %87 : vector<8x128xf32> to vector<1x8x128xf32>
    tpu.vector_store %arg5[%88, %c0_43, %c0_44], %91 {strides = array<i32>} : memref<8x8x128xf32, #tpu.memory_space<vmem>>, vector<1x8x128xf32>,
    %c3_i32 = arith.constant 3 : i32
    %c0_45 = arith.constant 0 : index
    %c0_46 = arith.constant 0 : index
    %92 = vector.load %arg6[%c0_45, %c0_46] : memref<8x128xf32, #tpu.memory_space<vmem>>, vector<8x128xf32>
    %c0_47 = arith.constant 0 : index
    %c0_48 = arith.constant 0 : index
    %93 = vector.load %arg4[%c0_47, %c0_48] : memref<128x128xf32, #tpu.memory_space<vmem>>, vector<128x128xf32>
    %cst_49 = arith.constant dense<0.000000e+00> : vector<8x128xf32>
    %94 = tpu.matmul %92, %93, %cst_49 {dimension_numbers = #tpu.dot_dimension_numbers<[1], [0], [0], [1], [0, 0, 1, 1], [], []>} : vector<8x128xf32>, vector<128x128xf32>, vector<8x128xf32> -> vector<8x128xf32>
    %95 = arith.index_cast %c3_i32 : i32 to index
    %c0_50 = arith.constant 0 : index
    %c0_51 = arith.constant 0 : index
    %96 = vector.load %arg2[%95, %c0_50, %c0_51] : memref<8x8x128xf32, #tpu.memory_space<vmem>>, vector<1x8x128xf32>
    %97 = vector.shape_cast %96 : vector<1x8x128xf32> to vector<8x128xf32>
    %98 = arith.addf %94, %97 : vector<8x128xf32>
    %cst_52 = arith.constant 0.000000e+00 : f32
    %99 = vector.broadcast %cst_52 : f32 to vector<8x128xf32>
    %100 = arith.select %5, %98, %99 : vector<8x128xi1>, vector<8x128xf32>
    %c0_53 = arith.constant 0 : index
    %c0_54 = arith.constant 0 : index
    %101 = vector.load %arg6[%c0_53, %c0_54] : memref<8x128xf32, #tpu.memory_space<vmem>>, vector<8x128xf32>
    tpu.vector_store %arg6[%c0_53, %c0_54], %100 {strides = array<i32>} : memref<8x128xf32, #tpu.memory_space<vmem>>, vector<8x128xf32>,
    %102 = arith.addf %98, %13 : vector<8x128xf32>
    %cst_55 = arith.constant dense<0xFF800000> : vector<8xf32>
    %103 = vector.multi_reduction <maximumf>, %102, %cst_55 [1] : vector<8x128xf32> to vector<8xf32>
    %104 = vector.shape_cast %103 : vector<8xf32> to vector<8x1xf32>
    %105 = vector.broadcast %104 : vector<8x1xf32> to vector<8x128xf32>
    %106 = arith.subf %102, %105 : vector<8x128xf32>
    %107 = math.exp %106 : vector<8x128xf32>
    %cst_56 = arith.constant dense<0.000000e+00> : vector<8xf32>
    %108 = vector.multi_reduction <add>, %107, %cst_56 [1] : vector<8x128xf32> to vector<8xf32>
    %109 = vector.shape_cast %108 : vector<8xf32> to vector<8x1xf32>
    %110 = math.log %109 : vector<8x1xf32>
    %111 = vector.broadcast %110 : vector<8x1xf32> to vector<8x128xf32>
    %112 = arith.subf %106, %111 : vector<8x128xf32>
    %113 = arith.select %10, %112, %98 : vector<8x128xi1>, vector<8x128xf32>
    %114 = arith.index_cast %c3_i32 : i32 to index
    %c0_57 = arith.constant 0 : index
    %c0_58 = arith.constant 0 : index
    %115 = vector.load %arg5[%114, %c0_57, %c0_58] : memref<8x8x128xf32, #tpu.memory_space<vmem>>, vector<1x8x128xf32>
    %116 = vector.shape_cast %115 : vector<1x8x128xf32> to vector<8x128xf32>
    %117 = vector.shape_cast %113 : vector<8x128xf32> to vector<1x8x128xf32>
    tpu.vector_store %arg5[%114, %c0_57, %c0_58], %117 {strides = array<i32>} : memref<8x8x128xf32, #tpu.memory_space<vmem>>, vector<1x8x128xf32>,
    %c4_i32 = arith.constant 4 : i32
    %c0_59 = arith.constant 0 : index
    %c0_60 = arith.constant 0 : index
    %118 = vector.load %arg6[%c0_59, %c0_60] : memref<8x128xf32, #tpu.memory_space<vmem>>, vector<8x128xf32>
    %c0_61 = arith.constant 0 : index
    %c0_62 = arith.constant 0 : index
    %119 = vector.load %arg4[%c0_61, %c0_62] : memref<128x128xf32, #tpu.memory_space<vmem>>, vector<128x128xf32>
    %cst_63 = arith.constant dense<0.000000e+00> : vector<8x128xf32>
    %120 = tpu.matmul %118, %119, %cst_63 {dimension_numbers = #tpu.dot_dimension_numbers<[1], [0], [0], [1], [0, 0, 1, 1], [], []>} : vector<8x128xf32>, vector<128x128xf32>, vector<8x128xf32> -> vector<8x128xf32>
    %121 = arith.index_cast %c4_i32 : i32 to index
    %c0_64 = arith.constant 0 : index
    %c0_65 = arith.constant 0 : index
    %122 = vector.load %arg2[%121, %c0_64, %c0_65] : memref<8x8x128xf32, #tpu.memory_space<vmem>>, vector<1x8x128xf32>
    %123 = vector.shape_cast %122 : vector<1x8x128xf32> to vector<8x128xf32>
    %124 = arith.addf %120, %123 : vector<8x128xf32>
    %cst_66 = arith.constant 0.000000e+00 : f32
    %125 = vector.broadcast %cst_66 : f32 to vector<8x128xf32>
    %126 = arith.select %5, %124, %125 : vector<8x128xi1>, vector<8x128xf32>
    %c0_67 = arith.constant 0 : index
    %c0_68 = arith.constant 0 : index
    %127 = vector.load %arg6[%c0_67, %c0_68] : memref<8x128xf32, #tpu.memory_space<vmem>>, vector<8x128xf32>
    tpu.vector_store %arg6[%c0_67, %c0_68], %126 {strides = array<i32>} : memref<8x128xf32, #tpu.memory_space<vmem>>, vector<8x128xf32>,
    %128 = arith.addf %124, %13 : vector<8x128xf32>
    %cst_69 = arith.constant dense<0xFF800000> : vector<8xf32>
    %129 = vector.multi_reduction <maximumf>, %128, %cst_69 [1] : vector<8x128xf32> to vector<8xf32>
    %130 = vector.shape_cast %129 : vector<8xf32> to vector<8x1xf32>
    %131 = vector.broadcast %130 : vector<8x1xf32> to vector<8x128xf32>
    %132 = arith.subf %128, %131 : vector<8x128xf32>
    %133 = math.exp %132 : vector<8x128xf32>
    %cst_70 = arith.constant dense<0.000000e+00> : vector<8xf32>
    %134 = vector.multi_reduction <add>, %133, %cst_70 [1] : vector<8x128xf32> to vector<8xf32>
    %135 = vector.shape_cast %134 : vector<8xf32> to vector<8x1xf32>
    %136 = math.log %135 : vector<8x1xf32>
    %137 = vector.broadcast %136 : vector<8x1xf32> to vector<8x128xf32>
    %138 = arith.subf %132, %137 : vector<8x128xf32>
    %139 = arith.select %10, %138, %124 : vector<8x128xi1>, vector<8x128xf32>
    %140 = arith.index_cast %c4_i32 : i32 to index
    %c0_71 = arith.constant 0 : index
    %c0_72 = arith.constant 0 : index
    %141 = vector.load %arg5[%140, %c0_71, %c0_72] : memref<8x8x128xf32, #tpu.memory_space<vmem>>, vector<1x8x128xf32>
    %142 = vector.shape_cast %141 : vector<1x8x128xf32> to vector<8x128xf32>
    %143 = vector.shape_cast %139 : vector<8x128xf32> to vector<1x8x128xf32>
    tpu.vector_store %arg5[%140, %c0_71, %c0_72], %143 {strides = array<i32>} : memref<8x8x128xf32, #tpu.memory_space<vmem>>, vector<1x8x128xf32>,
    %c5_i32 = arith.constant 5 : i32
    %c0_73 = arith.constant 0 : index
    %c0_74 = arith.constant 0 : index
    %144 = vector.load %arg6[%c0_73, %c0_74] : memref<8x128xf32, #tpu.memory_space<vmem>>, vector<8x128xf32>
    %c0_75 = arith.constant 0 : index
    %c0_76 = arith.constant 0 : index
    %145 = vector.load %arg4[%c0_75, %c0_76] : memref<128x128xf32, #tpu.memory_space<vmem>>, vector<128x128xf32>
    %cst_77 = arith.constant dense<0.000000e+00> : vector<8x128xf32>
    %146 = tpu.matmul %144, %145, %cst_77 {dimension_numbers = #tpu.dot_dimension_numbers<[1], [0], [0], [1], [0, 0, 1, 1], [], []>} : vector<8x128xf32>, vector<128x128xf32>, vector<8x128xf32> -> vector<8x128xf32>
    %147 = arith.index_cast %c5_i32 : i32 to index
    %c0_78 = arith.constant 0 : index
    %c0_79 = arith.constant 0 : index
    %148 = vector.load %arg2[%147, %c0_78, %c0_79] : memref<8x8x128xf32, #tpu.memory_space<vmem>>, vector<1x8x128xf32>
    %149 = vector.shape_cast %148 : vector<1x8x128xf32> to vector<8x128xf32>
    %150 = arith.addf %146, %149 : vector<8x128xf32>
    %cst_80 = arith.constant 0.000000e+00 : f32
    %151 = vector.broadcast %cst_80 : f32 to vector<8x128xf32>
    %152 = arith.select %5, %150, %151 : vector<8x128xi1>, vector<8x128xf32>
    %c0_81 = arith.constant 0 : index
    %c0_82 = arith.constant 0 : index
    %153 = vector.load %arg6[%c0_81, %c0_82] : memref<8x128xf32, #tpu.memory_space<vmem>>, vector<8x128xf32>
    tpu.vector_store %arg6[%c0_81, %c0_82], %152 {strides = array<i32>} : memref<8x128xf32, #tpu.memory_space<vmem>>, vector<8x128xf32>,
    %154 = arith.addf %150, %13 : vector<8x128xf32>
    %cst_83 = arith.constant dense<0xFF800000> : vector<8xf32>
    %155 = vector.multi_reduction <maximumf>, %154, %cst_83 [1] : vector<8x128xf32> to vector<8xf32>
    %156 = vector.shape_cast %155 : vector<8xf32> to vector<8x1xf32>
    %157 = vector.broadcast %156 : vector<8x1xf32> to vector<8x128xf32>
    %158 = arith.subf %154, %157 : vector<8x128xf32>
    %159 = math.exp %158 : vector<8x128xf32>
    %cst_84 = arith.constant dense<0.000000e+00> : vector<8xf32>
    %160 = vector.multi_reduction <add>, %159, %cst_84 [1] : vector<8x128xf32> to vector<8xf32>
    %161 = vector.shape_cast %160 : vector<8xf32> to vector<8x1xf32>
    %162 = math.log %161 : vector<8x1xf32>
    %163 = vector.broadcast %162 : vector<8x1xf32> to vector<8x128xf32>
    %164 = arith.subf %158, %163 : vector<8x128xf32>
    %165 = arith.select %10, %164, %150 : vector<8x128xi1>, vector<8x128xf32>
    %166 = arith.index_cast %c5_i32 : i32 to index
    %c0_85 = arith.constant 0 : index
    %c0_86 = arith.constant 0 : index
    %167 = vector.load %arg5[%166, %c0_85, %c0_86] : memref<8x8x128xf32, #tpu.memory_space<vmem>>, vector<1x8x128xf32>
    %168 = vector.shape_cast %167 : vector<1x8x128xf32> to vector<8x128xf32>
    %169 = vector.shape_cast %165 : vector<8x128xf32> to vector<1x8x128xf32>
    tpu.vector_store %arg5[%166, %c0_85, %c0_86], %169 {strides = array<i32>} : memref<8x8x128xf32, #tpu.memory_space<vmem>>, vector<1x8x128xf32>,
    %c6_i32 = arith.constant 6 : i32
    %c0_87 = arith.constant 0 : index
    %c0_88 = arith.constant 0 : index
    %170 = vector.load %arg6[%c0_87, %c0_88] : memref<8x128xf32, #tpu.memory_space<vmem>>, vector<8x128xf32>
    %c0_89 = arith.constant 0 : index
    %c0_90 = arith.constant 0 : index
    %171 = vector.load %arg4[%c0_89, %c0_90] : memref<128x128xf32, #tpu.memory_space<vmem>>, vector<128x128xf32>
    %cst_91 = arith.constant dense<0.000000e+00> : vector<8x128xf32>
    %172 = tpu.matmul %170, %171, %cst_91 {dimension_numbers = #tpu.dot_dimension_numbers<[1], [0], [0], [1], [0, 0, 1, 1], [], []>} : vector<8x128xf32>, vector<128x128xf32>, vector<8x128xf32> -> vector<8x128xf32>
    %173 = arith.index_cast %c6_i32 : i32 to index
    %c0_92 = arith.constant 0 : index
    %c0_93 = arith.constant 0 : index
    %174 = vector.load %arg2[%173, %c0_92, %c0_93] : memref<8x8x128xf32, #tpu.memory_space<vmem>>, vector<1x8x128xf32>
    %175 = vector.shape_cast %174 : vector<1x8x128xf32> to vector<8x128xf32>
    %176 = arith.addf %172, %175 : vector<8x128xf32>
    %cst_94 = arith.constant 0.000000e+00 : f32
    %177 = vector.broadcast %cst_94 : f32 to vector<8x128xf32>
    %178 = arith.select %5, %176, %177 : vector<8x128xi1>, vector<8x128xf32>
    %c0_95 = arith.constant 0 : index
    %c0_96 = arith.constant 0 : index
    %179 = vector.load %arg6[%c0_95, %c0_96] : memref<8x128xf32, #tpu.memory_space<vmem>>, vector<8x128xf32>
    tpu.vector_store %arg6[%c0_95, %c0_96], %178 {strides = array<i32>} : memref<8x128xf32, #tpu.memory_space<vmem>>, vector<8x128xf32>,
    %180 = arith.addf %176, %13 : vector<8x128xf32>
    %cst_97 = arith.constant dense<0xFF800000> : vector<8xf32>
    %181 = vector.multi_reduction <maximumf>, %180, %cst_97 [1] : vector<8x128xf32> to vector<8xf32>
    %182 = vector.shape_cast %181 : vector<8xf32> to vector<8x1xf32>
    %183 = vector.broadcast %182 : vector<8x1xf32> to vector<8x128xf32>
    %184 = arith.subf %180, %183 : vector<8x128xf32>
    %185 = math.exp %184 : vector<8x128xf32>
    %cst_98 = arith.constant dense<0.000000e+00> : vector<8xf32>
    %186 = vector.multi_reduction <add>, %185, %cst_98 [1] : vector<8x128xf32> to vector<8xf32>
    %187 = vector.shape_cast %186 : vector<8xf32> to vector<8x1xf32>
    %188 = math.log %187 : vector<8x1xf32>
    %189 = vector.broadcast %188 : vector<8x1xf32> to vector<8x128xf32>
    %190 = arith.subf %184, %189 : vector<8x128xf32>
    %191 = arith.select %10, %190, %176 : vector<8x128xi1>, vector<8x128xf32>
    %192 = arith.index_cast %c6_i32 : i32 to index
    %c0_99 = arith.constant 0 : index
    %c0_100 = arith.constant 0 : index
    %193 = vector.load %arg5[%192, %c0_99, %c0_100] : memref<8x8x128xf32, #tpu.memory_space<vmem>>, vector<1x8x128xf32>
    %194 = vector.shape_cast %193 : vector<1x8x128xf32> to vector<8x128xf32>
    %195 = vector.shape_cast %191 : vector<8x128xf32> to vector<1x8x128xf32>
    tpu.vector_store %arg5[%192, %c0_99, %c0_100], %195 {strides = array<i32>} : memref<8x8x128xf32, #tpu.memory_space<vmem>>, vector<1x8x128xf32>,
    %c7_i32 = arith.constant 7 : i32
    %c0_101 = arith.constant 0 : index
    %c0_102 = arith.constant 0 : index
    %196 = vector.load %arg6[%c0_101, %c0_102] : memref<8x128xf32, #tpu.memory_space<vmem>>, vector<8x128xf32>
    %c0_103 = arith.constant 0 : index
    %c0_104 = arith.constant 0 : index
    %197 = vector.load %arg4[%c0_103, %c0_104] : memref<128x128xf32, #tpu.memory_space<vmem>>, vector<128x128xf32>
    %cst_105 = arith.constant dense<0.000000e+00> : vector<8x128xf32>
    %198 = tpu.matmul %196, %197, %cst_105 {dimension_numbers = #tpu.dot_dimension_numbers<[1], [0], [0], [1], [0, 0, 1, 1], [], []>} : vector<8x128xf32>, vector<128x128xf32>, vector<8x128xf32> -> vector<8x128xf32>
    %199 = arith.index_cast %c7_i32 : i32 to index
    %c0_106 = arith.constant 0 : index
    %c0_107 = arith.constant 0 : index
    %200 = vector.load %arg2[%199, %c0_106, %c0_107] : memref<8x8x128xf32, #tpu.memory_space<vmem>>, vector<1x8x128xf32>
    %201 = vector.shape_cast %200 : vector<1x8x128xf32> to vector<8x128xf32>
    %202 = arith.addf %198, %201 : vector<8x128xf32>
    %cst_108 = arith.constant 0.000000e+00 : f32
    %203 = vector.broadcast %cst_108 : f32 to vector<8x128xf32>
    %204 = arith.select %5, %202, %203 : vector<8x128xi1>, vector<8x128xf32>
    %c0_109 = arith.constant 0 : index
    %c0_110 = arith.constant 0 : index
    %205 = vector.load %arg6[%c0_109, %c0_110] : memref<8x128xf32, #tpu.memory_space<vmem>>, vector<8x128xf32>
    tpu.vector_store %arg6[%c0_109, %c0_110], %204 {strides = array<i32>} : memref<8x128xf32, #tpu.memory_space<vmem>>, vector<8x128xf32>,
    %206 = arith.addf %202, %13 : vector<8x128xf32>
    %cst_111 = arith.constant dense<0xFF800000> : vector<8xf32>
    %207 = vector.multi_reduction <maximumf>, %206, %cst_111 [1] : vector<8x128xf32> to vector<8xf32>
    %208 = vector.shape_cast %207 : vector<8xf32> to vector<8x1xf32>
    %209 = vector.broadcast %208 : vector<8x1xf32> to vector<8x128xf32>
    %210 = arith.subf %206, %209 : vector<8x128xf32>
    %211 = math.exp %210 : vector<8x128xf32>
    %cst_112 = arith.constant dense<0.000000e+00> : vector<8xf32>
    %212 = vector.multi_reduction <add>, %211, %cst_112 [1] : vector<8x128xf32> to vector<8xf32>
    %213 = vector.shape_cast %212 : vector<8xf32> to vector<8x1xf32>
    %214 = math.log %213 : vector<8x1xf32>
    %215 = vector.broadcast %214 : vector<8x1xf32> to vector<8x128xf32>
    %216 = arith.subf %210, %215 : vector<8x128xf32>
    %217 = arith.select %10, %216, %202 : vector<8x128xi1>, vector<8x128xf32>
    %218 = arith.index_cast %c7_i32 : i32 to index
    %c0_113 = arith.constant 0 : index
    %c0_114 = arith.constant 0 : index
    %219 = vector.load %arg5[%218, %c0_113, %c0_114] : memref<8x8x128xf32, #tpu.memory_space<vmem>>, vector<1x8x128xf32>
    %220 = vector.shape_cast %219 : vector<1x8x128xf32> to vector<8x128xf32>
    %221 = vector.shape_cast %217 : vector<8x128xf32> to vector<1x8x128xf32>
    tpu.vector_store %arg5[%218, %c0_113, %c0_114], %221 {strides = array<i32>} : memref<8x8x128xf32, #tpu.memory_space<vmem>>, vector<1x8x128xf32>,
    %c8_i32 = arith.constant 8 : i32
    return
  }
  func.func @transform_0(%arg0: i32, %arg1: i32) -> (i32, i32, i32) {
    %c0_i32 = arith.constant 0 : i32
    %c0_i32_0 = arith.constant 0 : i32
    return %arg1, %arg0, %c0_i32 : i32, i32, i32
  }
  func.func @transform_1(%arg0: i32, %arg1: i32) -> (i32, i32) {
    %c0_i32 = arith.constant 0 : i32
    %c0_i32_0 = arith.constant 0 : i32
    return %arg0, %c0_i32 : i32, i32
  }
  func.func @transform_2(%arg0: i32, %arg1: i32) -> (i32, i32) {
    %c0_i32 = arith.constant 0 : i32
    %c0_i32_0 = arith.constant 0 : i32
    %c0_i32_1 = arith.constant 0 : i32
    return %c0_i32, %c0_i32_0 : i32, i32
  }
  func.func @transform_3(%arg0: i32, %arg1: i32) -> (i32, i32, i32) {
    %c0_i32 = arith.constant 0 : i32
    %c0_i32_0 = arith.constant 0 : i32
    return %arg1, %arg0, %c0_i32 : i32, i32, i32
  }
}

</mosaic_0001>

<llo_original>
// kernel: netz_forward_sequence.1
$region0: #{netz_forward_sequence.1}
  #allocation0 [shape = 'u32[]', space=smem, size = 0x4, offset = 0x4, fixed_abs, tag = 'smem constant byte address 0x4 - core index']
  #allocation1 [shape = 'u32[144,128]{1,0:T(1,128)}', space=vmem, size = 0x12000, scoped, tag = 'internal scratch']
  #allocation2 [shape = 'f32[8,128]{1,0:T(8,128)}', space=vmem, size = 0x1000, scoped, tag = 'scratch operand']
  %s0 = inlined_call_operand.vmem [shape: f32[8,8,128], index: 0, kind: input, shape index: {}]
  %s1 = inlined_call_operand.vmem [shape: f32[8,128], index: 1, kind: input, shape index: {}]
  %s2 = inlined_call_operand.vmem [shape: f32[128,128], index: 2, kind: input, shape index: {}]
  %s3 = inlined_call_operand.vmem [shape: f32[8,8,128], index: 3, kind: output, shape index: {}]
  %s4 = sld [smem:[#allocation0]]
  $region26: #{netz_forward_sequence.1} parent=0
    _
  %s6 = ssub.s32 1, %s4
  %s7 = scalar_select 0, %s6, %s4
  // Predicated region
  $region2: #{netz_forward_sequence.1} parent=0 // pred_check
    _
  $region3: #{netz_forward_sequence.1} parent=0 // pred_check_branch
    %9 = sbr.rel (0) target = $region5
  $region4: #{netz_forward_sequence.1} parent=0 // pred_region
    _
  $region5: #{netz_forward_sequence.1} parent=0 // pred_fallthru
    _
  // Predicated region
  $region6: #{netz_forward_sequence.1} parent=0 // pred_check
    _
  $region7: #{netz_forward_sequence.1} parent=0 // pred_check_branch
    %11 = sbr.rel (0) target = $region9
  $region8: #{netz_forward_sequence.1} parent=0 // pred_region
    _
  $region9: #{netz_forward_sequence.1} parent=0 // pred_fallthru
    _
  // Predicated region
  $region10: #{netz_forward_sequence.1} parent=0 // pred_check
    _
  $region11: #{netz_forward_sequence.1} parent=0 // pred_check_branch
    %13 = sbr.rel (0) target = $region13
  $region12: #{netz_forward_sequence.1} parent=0 // pred_region
    _
  $region13: #{netz_forward_sequence.1} parent=0 // pred_fallthru
    _
  %p14 = scmp.eq.s32.totalorder 0, 0
  // Predicated region
  $region14: #{netz_forward_sequence.1} parent=0 // pred_check
    %p15 = pneg %p14
  $region15: #{netz_forward_sequence.1} parent=0 // pred_check_branch
    %17 = sbr.rel (%p15) target = $region17
  $region16: #{netz_forward_sequence.1} parent=0 // pred_region
    %v18 = vld [vmem:[%s1] sm:$0xff]
    %19 = vst [vmem:[#allocation2] sm:$0xff] %v18
  $region17: #{netz_forward_sequence.1} parent=0 // pred_fallthru
    _
  %v20 = vlaneseq
  %v21 = vand.u32 %v20, 127
  %vm22 = vcmp.lt.s32.totalorder %v21, 32
  %vm23 = vcmp.ge.s32.totalorder %v21, 32
  %vm24 = vcmp.lt.s32.totalorder %v21, 40
  %vm25 = vmand %vm23, %vm24
  %v26 = vsel %vm25, 0.0, -1e+30
  %v27 = vld [vmem:[#allocation2] sm:$0xff]
  %v28 = vld [vmem:[%s2] sm:$0xff]
  %v29 = vld [vmem:[%s2 + $0x8] sm:$0xff]
  %v30 = vld [vmem:[%s2 + $0x10] sm:$0xff]
  %v31 = vld [vmem:[%s2 + $0x18] sm:$0xff]
  %v32 = vld [vmem:[%s2 + $0x20] sm:$0xff]
  %v33 = vld [vmem:[%s2 + $0x28] sm:$0xff]
  %v34 = vld [vmem:[%s2 + $0x30] sm:$0xff]
  %v35 = vld [vmem:[%s2 + $0x38] sm:$0xff]
  %v36 = vld [vmem:[%s2 + $0x40] sm:$0xff]
  %v37 = vld [vmem:[%s2 + $0x48] sm:$0xff]
  %v38 = vld [vmem:[%s2 + $0x50] sm:$0xff]
  %v39 = vld [vmem:[%s2 + $0x58] sm:$0xff]
  %v40 = vld [vmem:[%s2 + $0x60] sm:$0xff]
  %v41 = vld [vmem:[%s2 + $0x68] sm:$0xff]
  %v42 = vld [vmem:[%s2 + $0x70] sm:$0xff]
  %v43 = vld [vmem:[%s2 + $0x78] sm:$0xff]
  %v44 = vld [vmem:[%s0] sm:$0xff]
  %45 = vmatprep.subr.mxu0 0.0
  %46 = vmatpush1.msra.mxu0 %v28
  %47 = vmatprep.subr.mxu0 0.0
  %48 = vmatpush1.msra.mxu0 %v29
  %49 = vmatprep.subr.mxu0 0.0
  %50 = vmatpush1.msra.mxu0 %v30
  %51 = vmatprep.subr.mxu0 0.0
  %52 = vmatpush1.msra.mxu0 %v31
  %53 = vmatprep.subr.mxu0 0.0
  %54 = vmatpush1.msra.mxu0 %v32
  %55 = vmatprep.subr.mxu0 0.0
  %56 = vmatpush1.msra.mxu0 %v33
  %57 = vmatprep.subr.mxu0 0.0
  %58 = vmatpush1.msra.mxu0 %v34
  %59 = vmatprep.subr.mxu0 0.0
  %60 = vmatpush1.msra.mxu0 %v35
  %61 = vmatprep.subr.mxu0 0.0
  %62 = vmatpush1.msra.mxu0 %v36
  %63 = vmatprep.subr.mxu0 0.0
  %64 = vmatpush1.msra.mxu0 %v37
  %65 = vmatprep.subr.mxu0 0.0
  %66 = vmatpush1.msra.mxu0 %v38
  %67 = vmatprep.subr.mxu0 0.0
  %68 = vmatpush1.msra.mxu0 %v39
  %69 = vmatprep.subr.mxu0 0.0
  %70 = vmatpush1.msra.mxu0 %v40
  %71 = vmatprep.subr.mxu0 0.0
  %72 = vmatpush1.msra.mxu0 %v41
  %73 = vmatprep.subr.mxu0 0.0
  %74 = vmatpush1.msra.mxu0 %v42
  %75 = vmatprep.subr.mxu0 0.0
  %76 = vmatpush1.msra.mxu0 %v43
  %77 = vmatprep.subr.mxu0 0.0
  %78 = vmatpush1.msra.mxu0 0.0
  %79 = vmatprep.subr.mxu0 0.0
  %80 = vmatpush1.msra.mxu0 0.0
  %81 = vmatprep.subr.mxu0 0.0
  %82 = vmatpush1.msra.mxu0 0.0
  %83 = vmatprep.subr.mxu0 0.0
  %84 = vmatpush1.msra.mxu0 0.0
  %85 = vmatprep.subr.mxu0 0.0
  %86 = vmatpush1.msra.mxu0 0.0
  %87 = vmatprep.subr.mxu0 0.0
  %88 = vmatpush1.msra.mxu0 0.0
  %89 = vmatprep.subr.mxu0 0.0
  %90 = vmatpush1.msra.mxu0 0.0
  %91 = vmatprep.subr.mxu0 0.0
  %92 = vmatpush1.msra.mxu0 0.0
  %93 = vmatprep.subr.mxu0 0.0
  %94 = vmatpush1.msra.mxu0 0.0
  %95 = vmatprep.subr.mxu0 0.0
  %96 = vmatpush1.msra.mxu0 0.0
  %97 = vmatprep.subr.mxu0 0.0
  %98 = vmatpush1.msra.mxu0 0.0
  %99 = vmatprep.subr.mxu0 0.0
  %100 = vmatpush1.msra.mxu0 0.0
  %101 = vmatprep.subr.mxu0 0.0
  %102 = vmatpush1.msra.mxu0 0.0
  %103 = vmatprep.subr.mxu0 0.0
  %104 = vmatpush1.msra.mxu0 0.0
  %105 = vmatprep.subr.mxu0 0.0
  %106 = vmatpush1.msra.mxu0 0.0
  %107 = vmatprep.subr.mxu0 0.0
  %108 = vmatpush1.msra.mxu0 0.0
  %109 = vmatprep.mubr.f32.mxu0 0.0
  %110 = vmatmul.mubr.f32.gmra.mrb[0].mxu0 %v27
  %v111 = vpop.f32.mrb[0].mxu0
  %v112 = vadd.f32 %v44, %v111
  %v113 = vpop.f32.mrb[0].mxu0
  %114 = vdwg.mxu0
  %v115 = vsel %vm22, %v112, 0.0
  %116 = vst [vmem:[#allocation2] sm:$0xff] %v115
  %v117 = vadd.f32 %v112, %v26
  %118 = vmax.xlane.f32.xlu0 %v117
  %v119 = vpop.xlane.xlu0 %118
  %v120 = vsub.f32 %v117, %v119
  %v121 = vmul.f32 %v120, 1.442695
  %v122 = vpow.pop %v121
  %123 = vadd.xlane.f32.xlu0 %v122
  %v124 = vpop.xlane.xlu0 %123
  %v125 = vlog2.pop %v124
  %v126 = vmul.f32 %v125, 0.6931472
  %v127 = vsub.f32 %v120, %v126
  %v128 = vsel %vm25, %v127, %v112
  %129 = vst [vmem:[%s3] sm:$0xff] %v128
  %v130 = vld [vmem:[#allocation2] sm:$0xff]
  %v131 = vld [vmem:[%s2] sm:$0xff]
  %v132 = vld [vmem:[%s2 + $0x8] sm:$0xff]
  %v133 = vld [vmem:[%s2 + $0x10] sm:$0xff]
  %v134 = vld [vmem:[%s2 + $0x18] sm:$0xff]
  %v135 = vld [vmem:[%s2 + $0x20] sm:$0xff]
  %v136 = vld [vmem:[%s2 + $0x28] sm:$0xff]
  %v137 = vld [vmem:[%s2 + $0x30] sm:$0xff]
  %v138 = vld [vmem:[%s2 + $0x38] sm:$0xff]
  %v139 = vld [vmem:[%s2 + $0x40] sm:$0xff]
  %v140 = vld [vmem:[%s2 + $0x48] sm:$0xff]
  %v141 = vld [vmem:[%s2 + $0x50] sm:$0xff]
  %v142 = vld [vmem:[%s2 + $0x58] sm:$0xff]
  %v143 = vld [vmem:[%s2 + $0x60] sm:$0xff]
  %v144 = vld [vmem:[%s2 + $0x68] sm:$0xff]
  %v145 = vld [vmem:[%s2 + $0x70] sm:$0xff]
  %v146 = vld [vmem:[%s2 + $0x78] sm:$0xff]
  %s147 = scalar_lea.vmem %s0, 8
  %v148 = vld [vmem:[%s147] sm:$0xff]
  %149 = vmatprep.subr.mxu0 0.0
  %150 = vmatpush1.msra.mxu0 %v131
  %151 = vmatprep.subr.mxu0 0.0
  %152 = vmatpush1.msra.mxu0 %v132
  %153 = vmatprep.subr.mxu0 0.0
  %154 = vmatpush1.msra.mxu0 %v133
  %155 = vmatprep.subr.mxu0 0.0
  %156 = vmatpush1.msra.mxu0 %v134
  %157 = vmatprep.subr.mxu0 0.0
  %158 = vmatpush1.msra.mxu0 %v135
  %159 = vmatprep.subr.mxu0 0.0
  %160 = vmatpush1.msra.mxu0 %v136
  %161 = vmatprep.subr.mxu0 0.0
  %162 = vmatpush1.msra.mxu0 %v137
  %163 = vmatprep.subr.mxu0 0.0
  %164 = vmatpush1.msra.mxu0 %v138
  %165 = vmatprep.subr.mxu0 0.0
  %166 = vmatpush1.msra.mxu0 %v139
  %167 = vmatprep.subr.mxu0 0.0
  %168 = vmatpush1.msra.mxu0 %v140
  %169 = vmatprep.subr.mxu0 0.0
  %170 = vmatpush1.msra.mxu0 %v141
  %171 = vmatprep.subr.mxu0 0.0
  %172 = vmatpush1.msra.mxu0 %v142
  %173 = vmatprep.subr.mxu0 0.0
  %174 = vmatpush1.msra.mxu0 %v143
  %175 = vmatprep.subr.mxu0 0.0
  %176 = vmatpush1.msra.mxu0 %v144
  %177 = vmatprep.subr.mxu0 0.0
  %178 = vmatpush1.msra.mxu0 %v145
  %179 = vmatprep.subr.mxu0 0.0
  %180 = vmatpush1.msra.mxu0 %v146
  %181 = vmatprep.subr.mxu0 0.0
  %182 = vmatpush1.msra.mxu0 0.0
  %183 = vmatprep.subr.mxu0 0.0
  %184 = vmatpush1.msra.mxu0 0.0
  %185 = vmatprep.subr.mxu0 0.0
  %186 = vmatpush1.msra.mxu0 0.0
  %187 = vmatprep.subr.mxu0 0.0
  %188 = vmatpush1.msra.mxu0 0.0
  %189 = vmatprep.subr.mxu0 0.0
  %190 = vmatpush1.msra.mxu0 0.0
  %191 = vmatprep.subr.mxu0 0.0
  %192 = vmatpush1.msra.mxu0 0.0
  %193 = vmatprep.subr.mxu0 0.0
  %194 = vmatpush1.msra.mxu0 0.0
  %195 = vmatprep.subr.mxu0 0.0
  %196 = vmatpush1.msra.mxu0 0.0
  %197 = vmatprep.subr.mxu0 0.0
  %198 = vmatpush1.msra.mxu0 0.0
  %199 = vmatprep.subr.mxu0 0.0
  %200 = vmatpush1.msra.mxu0 0.0
  %201 = vmatprep.subr.mxu0 0.0
  %202 = vmatpush1.msra.mxu0 0.0
  %203 = vmatprep.subr.mxu0 0.0
  %204 = vmatpush1.msra.mxu0 0.0
  %205 = vmatprep.subr.mxu0 0.0
  %206 = vmatpush1.msra.mxu0 0.0
  %207 = vmatprep.subr.mxu0 0.0
  %208 = vmatpush1.msra.mxu0 0.0
  %209 = vmatprep.subr.mxu0 0.0
  %210 = vmatpush1.msra.mxu0 0.0
  %211 = vmatprep.subr.mxu0 0.0
  %212 = vmatpush1.msra.mxu0 0.0
  %213 = vmatprep.mubr.f32.mxu0 0.0
  %214 = vmatmul.mubr.f32.gmra.mrb[0].mxu0 %v130
  %v215 = vpop.f32.mrb[0].mxu0
  %v216 = vadd.f32 %v148, %v215
  %v217 = vpop.f32.mrb[0].mxu0
  %218 = vdwg.mxu0
  %v219 = vsel %vm22, %v216, 0.0
  %220 = vst [vmem:[#allocation2] sm:$0xff] %v219
  %v221 = vadd.f32 %v216, %v26
  %222 = vmax.xlane.f32.xlu0 %v221
  %v223 = vpop.xlane.xlu0 %222
  %v224 = vsub.f32 %v221, %v223
  %v225 = vmul.f32 %v224, 1.442695
  %v226 = vpow.pop %v225
  %227 = vadd.xlane.f32.xlu0 %v226
  %v228 = vpop.xlane.xlu0 %227
  %v229 = vlog2.pop %v228
  %v230 = vmul.f32 %v229, 0.6931472
  %v231 = vsub.f32 %v224, %v230
  %v232 = vsel %vm25, %v231, %v216
  %s233 = scalar_lea.vmem %s3, 8
  %234 = vst [vmem:[%s233] sm:$0xff] %v232
  %v235 = vld [vmem:[#allocation2] sm:$0xff]
  %v236 = vld [vmem:[%s2] sm:$0xff]
  %v237 = vld [vmem:[%s2 + $0x8] sm:$0xff]
  %v238 = vld [vmem:[%s2 + $0x10] sm:$0xff]
  %v239 = vld [vmem:[%s2 + $0x18] sm:$0xff]
  %v240 = vld [vmem:[%s2 + $0x20] sm:$0xff]
  %v241 = vld [vmem:[%s2 + $0x28] sm:$0xff]
  %v242 = vld [vmem:[%s2 + $0x30] sm:$0xff]
  %v243 = vld [vmem:[%s2 + $0x38] sm:$0xff]
  %v244 = vld [vmem:[%s2 + $0x40] sm:$0xff]
  %v245 = vld [vmem:[%s2 + $0x48] sm:$0xff]
  %v246 = vld [vmem:[%s2 + $0x50] sm:$0xff]
  %v247 = vld [vmem:[%s2 + $0x58] sm:$0xff]
  %v248 = vld [vmem:[%s2 + $0x60] sm:$0xff]
  %v249 = vld [vmem:[%s2 + $0x68] sm:$0xff]
  %v250 = vld [vmem:[%s2 + $0x70] sm:$0xff]
  %v251 = vld [vmem:[%s2 + $0x78] sm:$0xff]
  %s252 = scalar_lea.vmem %s0, 16
  %v253 = vld [vmem:[%s252] sm:$0xff]
  %254 = vmatprep.subr.mxu0 0.0
  %255 = vmatpush1.msra.mxu0 %v236
  %256 = vmatprep.subr.mxu0 0.0
  %257 = vmatpush1.msra.mxu0 %v237
  %258 = vmatprep.subr.mxu0 0.0
  %259 = vmatpush1.msra.mxu0 %v238
  %260 = vmatprep.subr.mxu0 0.0
  %261 = vmatpush1.msra.mxu0 %v239
  %262 = vmatprep.subr.mxu0 0.0
  %263 = vmatpush1.msra.mxu0 %v240
  %264 = vmatprep.subr.mxu0 0.0
  %265 = vmatpush1.msra.mxu0 %v241
  %266 = vmatprep.subr.mxu0 0.0
  %267 = vmatpush1.msra.mxu0 %v242
  %268 = vmatprep.subr.mxu0 0.0
  %269 = vmatpush1.msra.mxu0 %v243
  %270 = vmatprep.subr.mxu0 0.0
  %271 = vmatpush1.msra.mxu0 %v244
  %272 = vmatprep.subr.mxu0 0.0
  %273 = vmatpush1.msra.mxu0 %v245
  %274 = vmatprep.subr.mxu0 0.0
  %275 = vmatpush1.msra.mxu0 %v246
  %276 = vmatprep.subr.mxu0 0.0
  %277 = vmatpush1.msra.mxu0 %v247
  %278 = vmatprep.subr.mxu0 0.0
  %279 = vmatpush1.msra.mxu0 %v248
  %280 = vmatprep.subr.mxu0 0.0
  %281 = vmatpush1.msra.mxu0 %v249
  %282 = vmatprep.subr.mxu0 0.0
  %283 = vmatpush1.msra.mxu0 %v250
  %284 = vmatprep.subr.mxu0 0.0
  %285 = vmatpush1.msra.mxu0 %v251
  %286 = vmatprep.subr.mxu0 0.0
  %287 = vmatpush1.msra.mxu0 0.0
  %288 = vmatprep.subr.mxu0 0.0
  %289 = vmatpush1.msra.mxu0 0.0
  %290 = vmatprep.subr.mxu0 0.0
  %291 = vmatpush1.msra.mxu0 0.0
  %292 = vmatprep.subr.mxu0 0.0
  %293 = vmatpush1.msra.mxu0 0.0
  %294 = vmatprep.subr.mxu0 0.0
  %295 = vmatpush1.msra.mxu0 0.0
  %296 = vmatprep.subr.mxu0 0.0
  %297 = vmatpush1.msra.mxu0 0.0
  %298 = vmatprep.subr.mxu0 0.0
  %299 = vmatpush1.msra.mxu0 0.0
  %300 = vmatprep.subr.mxu0 0.0
  %301 = vmatpush1.msra.mxu0 0.0
  %302 = vmatprep.subr.mxu0 0.0
  %303 = vmatpush1.msra.mxu0 0.0
  %304 = vmatprep.subr.mxu0 0.0
  %305 = vmatpush1.msra.mxu0 0.0
  %306 = vmatprep.subr.mxu0 0.0
  %307 = vmatpush1.msra.mxu0 0.0
  %308 = vmatprep.subr.mxu0 0.0
  %309 = vmatpush1.msra.mxu0 0.0
  %310 = vmatprep.subr.mxu0 0.0
  %311 = vmatpush1.msra.mxu0 0.0
  %312 = vmatprep.subr.mxu0 0.0
  %313 = vmatpush1.msra.mxu0 0.0
  %314 = vmatprep.subr.mxu0 0.0
  %315 = vmatpush1.msra.mxu0 0.0
  %316 = vmatprep.subr.mxu0 0.0
  %317 = vmatpush1.msra.mxu0 0.0
  %318 = vmatprep.mubr.f32.mxu0 0.0
  %319 = vmatmul.mubr.f32.gmra.mrb[0].mxu0 %v235
  %v320 = vpop.f32.mrb[0].mxu0
  %v321 = vadd.f32 %v253, %v320
  %v322 = vpop.f32.mrb[0].mxu0
  %323 = vdwg.mxu0
  %v324 = vsel %vm22, %v321, 0.0
  %325 = vst [vmem:[#allocation2] sm:$0xff] %v324
  %v326 = vadd.f32 %v321, %v26
  %327 = vmax.xlane.f32.xlu0 %v326
  %v328 = vpop.xlane.xlu0 %327
  %v329 = vsub.f32 %v326, %v328
  %v330 = vmul.f32 %v329, 1.442695
  %v331 = vpow.pop %v330
  %332 = vadd.xlane.f32.xlu0 %v331
  %v333 = vpop.xlane.xlu0 %332
  %v334 = vlog2.pop %v333
  %v335 = vmul.f32 %v334, 0.6931472
  %v336 = vsub.f32 %v329, %v335
  %v337 = vsel %vm25, %v336, %v321
  %s338 = scalar_lea.vmem %s3, 16
  %339 = vst [vmem:[%s338] sm:$0xff] %v337
  %v340 = vld [vmem:[#allocation2] sm:$0xff]
  %v341 = vld [vmem:[%s2] sm:$0xff]
  %v342 = vld [vmem:[%s2 + $0x8] sm:$0xff]
  %v343 = vld [vmem:[%s2 + $0x10] sm:$0xff]
  %v344 = vld [vmem:[%s2 + $0x18] sm:$0xff]
  %v345 = vld [vmem:[%s2 + $0x20] sm:$0xff]
  %v346 = vld [vmem:[%s2 + $0x28] sm:$0xff]
  %v347 = vld [vmem:[%s2 + $0x30] sm:$0xff]
  %v348 = vld [vmem:[%s2 + $0x38] sm:$0xff]
  %v349 = vld [vmem:[%s2 + $0x40] sm:$0xff]
  %v350 = vld [vmem:[%s2 + $0x48] sm:$0xff]
  %v351 = vld [vmem:[%s2 + $0x50] sm:$0xff]
  %v352 = vld [vmem:[%s2 + $0x58] sm:$0xff]
  %v353 = vld [vmem:[%s2 + $0x60] sm:$0xff]
  %v354 = vld [vmem:[%s2 + $0x68] sm:$0xff]
  %v355 = vld [vmem:[%s2 + $0x70] sm:$0xff]
  %v356 = vld [vmem:[%s2 + $0x78] sm:$0xff]
  %s357 = scalar_lea.vmem %s0, 24
  %v358 = vld [vmem:[%s357] sm:$0xff]
  %359 = vmatprep.subr.mxu0 0.0
  %360 = vmatpush1.msra.mxu0 %v341
  %361 = vmatprep.subr.mxu0 0.0
  %362 = vmatpush1.msra.mxu0 %v342
  %363 = vmatprep.subr.mxu0 0.0
  %364 = vmatpush1.msra.mxu0 %v343
  %365 = vmatprep.subr.mxu0 0.0
  %366 = vmatpush1.msra.mxu0 %v344
  %367 = vmatprep.subr.mxu0 0.0
  %368 = vmatpush1.msra.mxu0 %v345
  %369 = vmatprep.subr.mxu0 0.0
  %370 = vmatpush1.msra.mxu0 %v346
  %371 = vmatprep.subr.mxu0 0.0
  %372 = vmatpush1.msra.mxu0 %v347
  %373 = vmatprep.subr.mxu0 0.0
  %374 = vmatpush1.msra.mxu0 %v348
  %375 = vmatprep.subr.mxu0 0.0
  %376 = vmatpush1.msra.mxu0 %v349
  %377 = vmatprep.subr.mxu0 0.0
  %378 = vmatpush1.msra.mxu0 %v350
  %379 = vmatprep.subr.mxu0 0.0
  %380 = vmatpush1.msra.mxu0 %v351
  %381 = vmatprep.subr.mxu0 0.0
  %382 = vmatpush1.msra.mxu0 %v352
  %383 = vmatprep.subr.mxu0 0.0
  %384 = vmatpush1.msra.mxu0 %v353
  %385 = vmatprep.subr.mxu0 0.0
  %386 = vmatpush1.msra.mxu0 %v354
  %387 = vmatprep.subr.mxu0 0.0
  %388 = vmatpush1.msra.mxu0 %v355
  %389 = vmatprep.subr.mxu0 0.0
  %390 = vmatpush1.msra.mxu0 %v356
  %391 = vmatprep.subr.mxu0 0.0
  %392 = vmatpush1.msra.mxu0 0.0
  %393 = vmatprep.subr.mxu0 0.0
  %394 = vmatpush1.msra.mxu0 0.0
  %395 = vmatprep.subr.mxu0 0.0
  %396 = vmatpush1.msra.mxu0 0.0
  %397 = vmatprep.subr.mxu0 0.0
  %398 = vmatpush1.msra.mxu0 0.0
  %399 = vmatprep.subr.mxu0 0.0
  %400 = vmatpush1.msra.mxu0 0.0
  %401 = vmatprep.subr.mxu0 0.0
  %402 = vmatpush1.msra.mxu0 0.0
  %403 = vmatprep.subr.mxu0 0.0
  %404 = vmatpush1.msra.mxu0 0.0
  %405 = vmatprep.subr.mxu0 0.0
  %406 = vmatpush1.msra.mxu0 0.0
  %407 = vmatprep.subr.mxu0 0.0
  %408 = vmatpush1.msra.mxu0 0.0
  %409 = vmatprep.subr.mxu0 0.0
  %410 = vmatpush1.msra.mxu0 0.0
  %411 = vmatprep.subr.mxu0 0.0
  %412 = vmatpush1.msra.mxu0 0.0
  %413 = vmatprep.subr.mxu0 0.0
  %414 = vmatpush1.msra.mxu0 0.0
  %415 = vmatprep.subr.mxu0 0.0
  %416 = vmatpush1.msra.mxu0 0.0
  %417 = vmatprep.subr.mxu0 0.0
  %418 = vmatpush1.msra.mxu0 0.0
  %419 = vmatprep.subr.mxu0 0.0
  %420 = vmatpush1.msra.mxu0 0.0
  %421 = vmatprep.subr.mxu0 0.0
  %422 = vmatpush1.msra.mxu0 0.0
  %423 = vmatprep.mubr.f32.mxu0 0.0
  %424 = vmatmul.mubr.f32.gmra.mrb[0].mxu0 %v340
  %v425 = vpop.f32.mrb[0].mxu0
  %v426 = vadd.f32 %v358, %v425
  %v427 = vpop.f32.mrb[0].mxu0
  %428 = vdwg.mxu0
  %v429 = vsel %vm22, %v426, 0.0
  %430 = vst [vmem:[#allocation2] sm:$0xff] %v429
  %v431 = vadd.f32 %v426, %v26
  %432 = vmax.xlane.f32.xlu0 %v431
  %v433 = vpop.xlane.xlu0 %432
  %v434 = vsub.f32 %v431, %v433
  %v435 = vmul.f32 %v434, 1.442695
  %v436 = vpow.pop %v435
  %437 = vadd.xlane.f32.xlu0 %v436
  %v438 = vpop.xlane.xlu0 %437
  %v439 = vlog2.pop %v438
  %v440 = vmul.f32 %v439, 0.6931472
  %v441 = vsub.f32 %v434, %v440
  %v442 = vsel %vm25, %v441, %v426
  %s443 = scalar_lea.vmem %s3, 24
  %444 = vst [vmem:[%s443] sm:$0xff] %v442
  %v445 = vld [vmem:[#allocation2] sm:$0xff]
  %v446 = vld [vmem:[%s2] sm:$0xff]
  %v447 = vld [vmem:[%s2 + $0x8] sm:$0xff]
  %v448 = vld [vmem:[%s2 + $0x10] sm:$0xff]
  %v449 = vld [vmem:[%s2 + $0x18] sm:$0xff]
  %v450 = vld [vmem:[%s2 + $0x20] sm:$0xff]
  %v451 = vld [vmem:[%s2 + $0x28] sm:$0xff]
  %v452 = vld [vmem:[%s2 + $0x30] sm:$0xff]
  %v453 = vld [vmem:[%s2 + $0x38] sm:$0xff]
  %v454 = vld [vmem:[%s2 + $0x40] sm:$0xff]
  %v455 = vld [vmem:[%s2 + $0x48] sm:$0xff]
  %v456 = vld [vmem:[%s2 + $0x50] sm:$0xff]
  %v457 = vld [vmem:[%s2 + $0x58] sm:$0xff]
  %v458 = vld [vmem:[%s2 + $0x60] sm:$0xff]
  %v459 = vld [vmem:[%s2 + $0x68] sm:$0xff]
  %v460 = vld [vmem:[%s2 + $0x70] sm:$0xff]
  %v461 = vld [vmem:[%s2 + $0x78] sm:$0xff]
  %s462 = scalar_lea.vmem %s0, 32
  %v463 = vld [vmem:[%s462] sm:$0xff]
  %464 = vmatprep.subr.mxu0 0.0
  %465 = vmatpush1.msra.mxu0 %v446
  %466 = vmatprep.subr.mxu0 0.0
  %467 = vmatpush1.msra.mxu0 %v447
  %468 = vmatprep.subr.mxu0 0.0
  %469 = vmatpush1.msra.mxu0 %v448
  %470 = vmatprep.subr.mxu0 0.0
  %471 = vmatpush1.msra.mxu0 %v449
  %472 = vmatprep.subr.mxu0 0.0
  %473 = vmatpush1.msra.mxu0 %v450
  %474 = vmatprep.subr.mxu0 0.0
  %475 = vmatpush1.msra.mxu0 %v451
  %476 = vmatprep.subr.mxu0 0.0
  %477 = vmatpush1.msra.mxu0 %v452
  %478 = vmatprep.subr.mxu0 0.0
  %479 = vmatpush1.msra.mxu0 %v453
  %480 = vmatprep.subr.mxu0 0.0
  %481 = vmatpush1.msra.mxu0 %v454
  %482 = vmatprep.subr.mxu0 0.0
  %483 = vmatpush1.msra.mxu0 %v455
  %484 = vmatprep.subr.mxu0 0.0
  %485 = vmatpush1.msra.mxu0 %v456
  %486 = vmatprep.subr.mxu0 0.0
  %487 = vmatpush1.msra.mxu0 %v457
  %488 = vmatprep.subr.mxu0 0.0
  %489 = vmatpush1.msra.mxu0 %v458
  %490 = vmatprep.subr.mxu0 0.0
  %491 = vmatpush1.msra.mxu0 %v459
  %492 = vmatprep.subr.mxu0 0.0
  %493 = vmatpush1.msra.mxu0 %v460
  %494 = vmatprep.subr.mxu0 0.0
  %495 = vmatpush1.msra.mxu0 %v461
  %496 = vmatprep.subr.mxu0 0.0
  %497 = vmatpush1.msra.mxu0 0.0
  %498 = vmatprep.subr.mxu0 0.0
  %499 = vmatpush1.msra.mxu0 0.0
  %500 = vmatprep.subr.mxu0 0.0
  %501 = vmatpush1.msra.mxu0 0.0
  %502 = vmatprep.subr.mxu0 0.0
  %503 = vmatpush1.msra.mxu0 0.0
  %504 = vmatprep.subr.mxu0 0.0
  %505 = vmatpush1.msra.mxu0 0.0
  %506 = vmatprep.subr.mxu0 0.0
  %507 = vmatpush1.msra.mxu0 0.0
  %508 = vmatprep.subr.mxu0 0.0
  %509 = vmatpush1.msra.mxu0 0.0
  %510 = vmatprep.subr.mxu0 0.0
  %511 = vmatpush1.msra.mxu0 0.0
  %512 = vmatprep.subr.mxu0 0.0
  %513 = vmatpush1.msra.mxu0 0.0
  %514 = vmatprep.subr.mxu0 0.0
  %515 = vmatpush1.msra.mxu0 0.0
  %516 = vmatprep.subr.mxu0 0.0
  %517 = vmatpush1.msra.mxu0 0.0
  %518 = vmatprep.subr.mxu0 0.0
  %519 = vmatpush1.msra.mxu0 0.0
  %520 = vmatprep.subr.mxu0 0.0
  %521 = vmatpush1.msra.mxu0 0.0
  %522 = vmatprep.subr.mxu0 0.0
  %523 = vmatpush1.msra.mxu0 0.0
  %524 = vmatprep.subr.mxu0 0.0
  %525 = vmatpush1.msra.mxu0 0.0
  %526 = vmatprep.subr.mxu0 0.0
  %527 = vmatpush1.msra.mxu0 0.0
  %528 = vmatprep.mubr.f32.mxu0 0.0
  %529 = vmatmul.mubr.f32.gmra.mrb[0].mxu0 %v445
  %v530 = vpop.f32.mrb[0].mxu0
  %v531 = vadd.f32 %v463, %v530
  %v532 = vpop.f32.mrb[0].mxu0
  %533 = vdwg.mxu0
  %v534 = vsel %vm22, %v531, 0.0
  %535 = vst [vmem:[#allocation2] sm:$0xff] %v534
  %v536 = vadd.f32 %v531, %v26
  %537 = vmax.xlane.f32.xlu0 %v536
  %v538 = vpop.xlane.xlu0 %537
  %v539 = vsub.f32 %v536, %v538
  %v540 = vmul.f32 %v539, 1.442695
  %v541 = vpow.pop %v540
  %542 = vadd.xlane.f32.xlu0 %v541
  %v543 = vpop.xlane.xlu0 %542
  %v544 = vlog2.pop %v543
  %v545 = vmul.f32 %v544, 0.6931472
  %v546 = vsub.f32 %v539, %v545
  %v547 = vsel %vm25, %v546, %v531
  %s548 = scalar_lea.vmem %s3, 32
  %549 = vst [vmem:[%s548] sm:$0xff] %v547
  %v550 = vld [vmem:[#allocation2] sm:$0xff]
  %v551 = vld [vmem:[%s2] sm:$0xff]
  %v552 = vld [vmem:[%s2 + $0x8] sm:$0xff]
  %v553 = vld [vmem:[%s2 + $0x10] sm:$0xff]
  %v554 = vld [vmem:[%s2 + $0x18] sm:$0xff]
  %v555 = vld [vmem:[%s2 + $0x20] sm:$0xff]
  %v556 = vld [vmem:[%s2 + $0x28] sm:$0xff]
  %v557 = vld [vmem:[%s2 + $0x30] sm:$0xff]
  %v558 = vld [vmem:[%s2 + $0x38] sm:$0xff]
  %v559 = vld [vmem:[%s2 + $0x40] sm:$0xff]
  %v560 = vld [vmem:[%s2 + $0x48] sm:$0xff]
  %v561 = vld [vmem:[%s2 + $0x50] sm:$0xff]
  %v562 = vld [vmem:[%s2 + $0x58] sm:$0xff]
  %v563 = vld [vmem:[%s2 + $0x60] sm:$0xff]
  %v564 = vld [vmem:[%s2 + $0x68] sm:$0xff]
  %v565 = vld [vmem:[%s2 + $0x70] sm:$0xff]
  %v566 = vld [vmem:[%s2 + $0x78] sm:$0xff]
  %s567 = scalar_lea.vmem %s0, 40
  %v568 = vld [vmem:[%s567] sm:$0xff]
  %569 = vmatprep.subr.mxu0 0.0
  %570 = vmatpush1.msra.mxu0 %v551
  %571 = vmatprep.subr.mxu0 0.0
  %572 = vmatpush1.msra.mxu0 %v552
  %573 = vmatprep.subr.mxu0 0.0
  %574 = vmatpush1.msra.mxu0 %v553
  %575 = vmatprep.subr.mxu0 0.0
  %576 = vmatpush1.msra.mxu0 %v554
  %577 = vmatprep.subr.mxu0 0.0
  %578 = vmatpush1.msra.mxu0 %v555
  %579 = vmatprep.subr.mxu0 0.0
  %580 = vmatpush1.msra.mxu0 %v556
  %581 = vmatprep.subr.mxu0 0.0
  %582 = vmatpush1.msra.mxu0 %v557
  %583 = vmatprep.subr.mxu0 0.0
  %584 = vmatpush1.msra.mxu0 %v558
  %585 = vmatprep.subr.mxu0 0.0
  %586 = vmatpush1.msra.mxu0 %v559
  %587 = vmatprep.subr.mxu0 0.0
  %588 = vmatpush1.msra.mxu0 %v560
  %589 = vmatprep.subr.mxu0 0.0
  %590 = vmatpush1.msra.mxu0 %v561
  %591 = vmatprep.subr.mxu0 0.0
  %592 = vmatpush1.msra.mxu0 %v562
  %593 = vmatprep.subr.mxu0 0.0
  %594 = vmatpush1.msra.mxu0 %v563
  %595 = vmatprep.subr.mxu0 0.0
  %596 = vmatpush1.msra.mxu0 %v564
  %597 = vmatprep.subr.mxu0 0.0
  %598 = vmatpush1.msra.mxu0 %v565
  %599 = vmatprep.subr.mxu0 0.0
  %600 = vmatpush1.msra.mxu0 %v566
  %601 = vmatprep.subr.mxu0 0.0
  %602 = vmatpush1.msra.mxu0 0.0
  %603 = vmatprep.subr.mxu0 0.0
  %604 = vmatpush1.msra.mxu0 0.0
  %605 = vmatprep.subr.mxu0 0.0
  %606 = vmatpush1.msra.mxu0 0.0
  %607 = vmatprep.subr.mxu0 0.0
  %608 = vmatpush1.msra.mxu0 0.0
  %609 = vmatprep.subr.mxu0 0.0
  %610 = vmatpush1.msra.mxu0 0.0
  %611 = vmatprep.subr.mxu0 0.0
  %612 = vmatpush1.msra.mxu0 0.0
  %613 = vmatprep.subr.mxu0 0.0
  %614 = vmatpush1.msra.mxu0 0.0
  %615 = vmatprep.subr.mxu0 0.0
  %616 = vmatpush1.msra.mxu0 0.0
  %617 = vmatprep.subr.mxu0 0.0
  %618 = vmatpush1.msra.mxu0 0.0
  %619 = vmatprep.subr.mxu0 0.0
  %620 = vmatpush1.msra.mxu0 0.0
  %621 = vmatprep.subr.mxu0 0.0
  %622 = vmatpush1.msra.mxu0 0.0
  %623 = vmatprep.subr.mxu0 0.0
  %624 = vmatpush1.msra.mxu0 0.0
  %625 = vmatprep.subr.mxu0 0.0
  %626 = vmatpush1.msra.mxu0 0.0
  %627 = vmatprep.subr.mxu0 0.0
  %628 = vmatpush1.msra.mxu0 0.0
  %629 = vmatprep.subr.mxu0 0.0
  %630 = vmatpush1.msra.mxu0 0.0
  %631 = vmatprep.subr.mxu0 0.0
  %632 = vmatpush1.msra.mxu0 0.0
  %633 = vmatprep.mubr.f32.mxu0 0.0
  %634 = vmatmul.mubr.f32.gmra.mrb[0].mxu0 %v550
  %v635 = vpop.f32.mrb[0].mxu0
  %v636 = vadd.f32 %v568, %v635
  %v637 = vpop.f32.mrb[0].mxu0
  %638 = vdwg.mxu0
  %v639 = vsel %vm22, %v636, 0.0
  %640 = vst [vmem:[#allocation2] sm:$0xff] %v639
  %v641 = vadd.f32 %v636, %v26
  %642 = vmax.xlane.f32.xlu0 %v641
  %v643 = vpop.xlane.xlu0 %642
  %v644 = vsub.f32 %v641, %v643
  %v645 = vmul.f32 %v644, 1.442695
  %v646 = vpow.pop %v645
  %647 = vadd.xlane.f32.xlu0 %v646
  %v648 = vpop.xlane.xlu0 %647
  %v649 = vlog2.pop %v648
  %v650 = vmul.f32 %v649, 0.6931472
  %v651 = vsub.f32 %v644, %v650
  %v652 = vsel %vm25, %v651, %v636
  %s653 = scalar_lea.vmem %s3, 40
  %654 = vst [vmem:[%s653] sm:$0xff] %v652
  %v655 = vld [vmem:[#allocation2] sm:$0xff]
  %v656 = vld [vmem:[%s2] sm:$0xff]
  %v657 = vld [vmem:[%s2 + $0x8] sm:$0xff]
  %v658 = vld [vmem:[%s2 + $0x10] sm:$0xff]
  %v659 = vld [vmem:[%s2 + $0x18] sm:$0xff]
  %v660 = vld [vmem:[%s2 + $0x20] sm:$0xff]
  %v661 = vld [vmem:[%s2 + $0x28] sm:$0xff]
  %v662 = vld [vmem:[%s2 + $0x30] sm:$0xff]
  %v663 = vld [vmem:[%s2 + $0x38] sm:$0xff]
  %v664 = vld [vmem:[%s2 + $0x40] sm:$0xff]
  %v665 = vld [vmem:[%s2 + $0x48] sm:$0xff]
  %v666 = vld [vmem:[%s2 + $0x50] sm:$0xff]
  %v667 = vld [vmem:[%s2 + $0x58] sm:$0xff]
  %v668 = vld [vmem:[%s2 + $0x60] sm:$0xff]
  %v669 = vld [vmem:[%s2 + $0x68] sm:$0xff]
  %v670 = vld [vmem:[%s2 + $0x70] sm:$0xff]
  %v671 = vld [vmem:[%s2 + $0x78] sm:$0xff]
  %s672 = scalar_lea.vmem %s0, 48
  %v673 = vld [vmem:[%s672] sm:$0xff]
  %674 = vmatprep.subr.mxu0 0.0
  %675 = vmatpush1.msra.mxu0 %v656
  %676 = vmatprep.subr.mxu0 0.0
  %677 = vmatpush1.msra.mxu0 %v657
  %678 = vmatprep.subr.mxu0 0.0
  %679 = vmatpush1.msra.mxu0 %v658
  %680 = vmatprep.subr.mxu0 0.0
  %681 = vmatpush1.msra.mxu0 %v659
  %682 = vmatprep.subr.mxu0 0.0
  %683 = vmatpush1.msra.mxu0 %v660
  %684 = vmatprep.subr.mxu0 0.0
  %685 = vmatpush1.msra.mxu0 %v661
  %686 = vmatprep.subr.mxu0 0.0
  %687 = vmatpush1.msra.mxu0 %v662
  %688 = vmatprep.subr.mxu0 0.0
  %689 = vmatpush1.msra.mxu0 %v663
  %690 = vmatprep.subr.mxu0 0.0
  %691 = vmatpush1.msra.mxu0 %v664
  %692 = vmatprep.subr.mxu0 0.0
  %693 = vmatpush1.msra.mxu0 %v665
  %694 = vmatprep.subr.mxu0 0.0
  %695 = vmatpush1.msra.mxu0 %v666
  %696 = vmatprep.subr.mxu0 0.0
  %697 = vmatpush1.msra.mxu0 %v667
  %698 = vmatprep.subr.mxu0 0.0
  %699 = vmatpush1.msra.mxu0 %v668
  %700 = vmatprep.subr.mxu0 0.0
  %701 = vmatpush1.msra.mxu0 %v669
  %702 = vmatprep.subr.mxu0 0.0
  %703 = vmatpush1.msra.mxu0 %v670
  %704 = vmatprep.subr.mxu0 0.0
  %705 = vmatpush1.msra.mxu0 %v671
  %706 = vmatprep.subr.mxu0 0.0
  %707 = vmatpush1.msra.mxu0 0.0
  %708 = vmatprep.subr.mxu0 0.0
  %709 = vmatpush1.msra.mxu0 0.0
  %710 = vmatprep.subr.mxu0 0.0
  %711 = vmatpush1.msra.mxu0 0.0
  %712 = vmatprep.subr.mxu0 0.0
  %713 = vmatpush1.msra.mxu0 0.0
  %714 = vmatprep.subr.mxu0 0.0
  %715 = vmatpush1.msra.mxu0 0.0
  %716 = vmatprep.subr.mxu0 0.0
  %717 = vmatpush1.msra.mxu0 0.0
  %718 = vmatprep.subr.mxu0 0.0
  %719 = vmatpush1.msra.mxu0 0.0
  %720 = vmatprep.subr.mxu0 0.0
  %721 = vmatpush1.msra.mxu0 0.0
  %722 = vmatprep.subr.mxu0 0.0
  %723 = vmatpush1.msra.mxu0 0.0
  %724 = vmatprep.subr.mxu0 0.0
  %725 = vmatpush1.msra.mxu0 0.0
  %726 = vmatprep.subr.mxu0 0.0
  %727 = vmatpush1.msra.mxu0 0.0
  %728 = vmatprep.subr.mxu0 0.0
  %729 = vmatpush1.msra.mxu0 0.0
  %730 = vmatprep.subr.mxu0 0.0
  %731 = vmatpush1.msra.mxu0 0.0
  %732 = vmatprep.subr.mxu0 0.0
  %733 = vmatpush1.msra.mxu0 0.0
  %734 = vmatprep.subr.mxu0 0.0
  %735 = vmatpush1.msra.mxu0 0.0
  %736 = vmatprep.subr.mxu0 0.0
  %737 = vmatpush1.msra.mxu0 0.0
  %738 = vmatprep.mubr.f32.mxu0 0.0
  %739 = vmatmul.mubr.f32.gmra.mrb[0].mxu0 %v655
  %v740 = vpop.f32.mrb[0].mxu0
  %v741 = vadd.f32 %v673, %v740
  %v742 = vpop.f32.mrb[0].mxu0
  %743 = vdwg.mxu0
  %v744 = vsel %vm22, %v741, 0.0
  %745 = vst [vmem:[#allocation2] sm:$0xff] %v744
  %v746 = vadd.f32 %v741, %v26
  %747 = vmax.xlane.f32.xlu0 %v746
  %v748 = vpop.xlane.xlu0 %747
  %v749 = vsub.f32 %v746, %v748
  %v750 = vmul.f32 %v749, 1.442695
  %v751 = vpow.pop %v750
  %752 = vadd.xlane.f32.xlu0 %v751
  %v753 = vpop.xlane.xlu0 %752
  %v754 = vlog2.pop %v753
  %v755 = vmul.f32 %v754, 0.6931472
  %v756 = vsub.f32 %v749, %v755
  %v757 = vsel %vm25, %v756, %v741
  %s758 = scalar_lea.vmem %s3, 48
  %759 = vst [vmem:[%s758] sm:$0xff] %v757
  %v760 = vld [vmem:[#allocation2] sm:$0xff]
  %v761 = vld [vmem:[%s2] sm:$0xff]
  %v762 = vld [vmem:[%s2 + $0x8] sm:$0xff]
  %v763 = vld [vmem:[%s2 + $0x10] sm:$0xff]
  %v764 = vld [vmem:[%s2 + $0x18] sm:$0xff]
  %v765 = vld [vmem:[%s2 + $0x20] sm:$0xff]
  %v766 = vld [vmem:[%s2 + $0x28] sm:$0xff]
  %v767 = vld [vmem:[%s2 + $0x30] sm:$0xff]
  %v768 = vld [vmem:[%s2 + $0x38] sm:$0xff]
  %v769 = vld [vmem:[%s2 + $0x40] sm:$0xff]
  %v770 = vld [vmem:[%s2 + $0x48] sm:$0xff]
  %v771 = vld [vmem:[%s2 + $0x50] sm:$0xff]
  %v772 = vld [vmem:[%s2 + $0x58] sm:$0xff]
  %v773 = vld [vmem:[%s2 + $0x60] sm:$0xff]
  %v774 = vld [vmem:[%s2 + $0x68] sm:$0xff]
  %v775 = vld [vmem:[%s2 + $0x70] sm:$0xff]
  %v776 = vld [vmem:[%s2 + $0x78] sm:$0xff]
  %s777 = scalar_lea.vmem %s0, 56
  %v778 = vld [vmem:[%s777] sm:$0xff]
  %779 = vmatprep.subr.mxu0 0.0
  %780 = vmatpush1.msra.mxu0 %v761
  %781 = vmatprep.subr.mxu0 0.0
  %782 = vmatpush1.msra.mxu0 %v762
  %783 = vmatprep.subr.mxu0 0.0
  %784 = vmatpush1.msra.mxu0 %v763
  %785 = vmatprep.subr.mxu0 0.0
  %786 = vmatpush1.msra.mxu0 %v764
  %787 = vmatprep.subr.mxu0 0.0
  %788 = vmatpush1.msra.mxu0 %v765
  %789 = vmatprep.subr.mxu0 0.0
  %790 = vmatpush1.msra.mxu0 %v766
  %791 = vmatprep.subr.mxu0 0.0
  %792 = vmatpush1.msra.mxu0 %v767
  %793 = vmatprep.subr.mxu0 0.0
  %794 = vmatpush1.msra.mxu0 %v768
  %795 = vmatprep.subr.mxu0 0.0
  %796 = vmatpush1.msra.mxu0 %v769
  %797 = vmatprep.subr.mxu0 0.0
  %798 = vmatpush1.msra.mxu0 %v770
  %799 = vmatprep.subr.mxu0 0.0
  %800 = vmatpush1.msra.mxu0 %v771
  %801 = vmatprep.subr.mxu0 0.0
  %802 = vmatpush1.msra.mxu0 %v772
  %803 = vmatprep.subr.mxu0 0.0
  %804 = vmatpush1.msra.mxu0 %v773
  %805 = vmatprep.subr.mxu0 0.0
  %806 = vmatpush1.msra.mxu0 %v774
  %807 = vmatprep.subr.mxu0 0.0
  %808 = vmatpush1.msra.mxu0 %v775
  %809 = vmatprep.subr.mxu0 0.0
  %810 = vmatpush1.msra.mxu0 %v776
  %811 = vmatprep.subr.mxu0 0.0
  %812 = vmatpush1.msra.mxu0 0.0
  %813 = vmatprep.subr.mxu0 0.0
  %814 = vmatpush1.msra.mxu0 0.0
  %815 = vmatprep.subr.mxu0 0.0
  %816 = vmatpush1.msra.mxu0 0.0
  %817 = vmatprep.subr.mxu0 0.0
  %818 = vmatpush1.msra.mxu0 0.0
  %819 = vmatprep.subr.mxu0 0.0
  %820 = vmatpush1.msra.mxu0 0.0
  %821 = vmatprep.subr.mxu0 0.0
  %822 = vmatpush1.msra.mxu0 0.0
  %823 = vmatprep.subr.mxu0 0.0
  %824 = vmatpush1.msra.mxu0 0.0
  %825 = vmatprep.subr.mxu0 0.0
  %826 = vmatpush1.msra.mxu0 0.0
  %827 = vmatprep.subr.mxu0 0.0
  %828 = vmatpush1.msra.mxu0 0.0
  %829 = vmatprep.subr.mxu0 0.0
  %830 = vmatpush1.msra.mxu0 0.0
  %831 = vmatprep.subr.mxu0 0.0
  %832 = vmatpush1.msra.mxu0 0.0
  %833 = vmatprep.subr.mxu0 0.0
  %834 = vmatpush1.msra.mxu0 0.0
  %835 = vmatprep.subr.mxu0 0.0
  %836 = vmatpush1.msra.mxu0 0.0
  %837 = vmatprep.subr.mxu0 0.0
  %838 = vmatpush1.msra.mxu0 0.0
  %839 = vmatprep.subr.mxu0 0.0
  %840 = vmatpush1.msra.mxu0 0.0
  %841 = vmatprep.subr.mxu0 0.0
  %842 = vmatpush1.msra.mxu0 0.0
  %843 = vmatprep.mubr.f32.mxu0 0.0
  %844 = vmatmul.mubr.f32.gmra.mrb[0].mxu0 %v760
  %v845 = vpop.f32.mrb[0].mxu0
  %v846 = vadd.f32 %v778, %v845
  %v847 = vpop.f32.mrb[0].mxu0
  %848 = vdwg.mxu0
  %v849 = vsel %vm22, %v846, 0.0
  %850 = vst [vmem:[#allocation2] sm:$0xff] %v849
  %v851 = vadd.f32 %v846, %v26
  %852 = vmax.xlane.f32.xlu0 %v851
  %v853 = vpop.xlane.xlu0 %852
  %v854 = vsub.f32 %v851, %v853
  %v855 = vmul.f32 %v854, 1.442695
  %v856 = vpow.pop %v855
  %857 = vadd.xlane.f32.xlu0 %v856
  %v858 = vpop.xlane.xlu0 %857
  %v859 = vlog2.pop %v858
  %v860 = vmul.f32 %v859, 0.6931472
  %v861 = vsub.f32 %v854, %v860
  %v862 = vsel %vm25, %v861, %v846
  %s863 = scalar_lea.vmem %s3, 56
  %864 = vst [vmem:[%s863] sm:$0xff] %v862
  // Predicated region
  $region18: #{netz_forward_sequence.1} parent=0 // pred_check
    _
  $region19: #{netz_forward_sequence.1} parent=0 // pred_check_branch
    %866 = sbr.rel (0) target = $region21
  $region20: #{netz_forward_sequence.1} parent=0 // pred_region
    _
  $region21: #{netz_forward_sequence.1} parent=0 // pred_fallthru
    _
  // Predicated region
  $region22: #{netz_forward_sequence.1} parent=0 // pred_check
    _
  $region23: #{netz_forward_sequence.1} parent=0 // pred_check_branch
    %868 = sbr.rel (0) target = $region25
  $region24: #{netz_forward_sequence.1} parent=0 // pred_region
    _
  $region25: #{netz_forward_sequence.1} parent=0 // pred_fallthru
    _

</llo_original>
